<compile_context>
chip_gen: v5e
topology: v5e:2x2
jax: 0.10.0
libtpu: 0.0.40
codegen_flags: <defaults>
</compile_context>

<pallas_src>
import jax
import jax.numpy as jnp
from jax.experimental import pallas as pl
from jax.experimental.pallas import tpu as pltpu

SUBLANE = 8                     # f32 sublane granularity (second-to-last dim)
DEFAULT_BATCH_TILE = 4096       # rows per grid step (large -> amortize step overhead)


def _round_up(n, m):
    return ((n + m - 1) // m) * m


def _make_mlp_kernel(num_layers):
    """Fused MLP kernel body for `num_layers` Linear(+ReLU) layers.

    refs = (x, w0, b0, w1, b1, ..., w_{L-1}, b_{L-1}, out)
      x:   (tb, in_dim)      f32
      w_l: (in_l, out_l)     f32   (true shapes, VMEM-resident across steps)
      b_l: (1, out_l)        f32
      out: (tb, out_last)    f32   (out_last == 1 for the output head)
    """

    def kernel(x_ref, *refs):
        out_ref = refs[-1]
        param_refs = refs[:-1]
        h = x_ref[...]                              # f32 (tb, in_dim)
        for l in range(num_layers):
            w = param_refs[2 * l][...]              # f32 (in_l, out_l)
            b = param_refs[2 * l + 1][...]          # f32 (1, out_l)
            h = jnp.dot(h, w, preferred_element_type=jnp.float32)
            h = jnp.maximum(h + b, 0.0)             # bias + ReLU
            # Dropout: identity at eval time.
        out_ref[...] = h.astype(out_ref.dtype)

    return kernel


def mlp_forward(x, weights, biases, *, batch_tile=DEFAULT_BATCH_TILE):
    """Run the fused MLP Pallas kernel.

    x:        (batch, input_dim) float32
    weights:  list of (in_l, out_l) float32
    biases:   list of (1, out_l) float32
    returns:  (batch, out_last) float32
    """
    num_layers = len(weights)
    batch, in_dim = x.shape
    out_dim = weights[-1].shape[1]

    x = x.astype(jnp.float32)
    params = []
    for w, b in zip(weights, biases):
        params.extend([w.astype(jnp.float32), b.astype(jnp.float32)])

    # ---- Batch tiling (sublane aligned; zero-pad tail rows) ----------------
    pbatch0 = _round_up(batch, SUBLANE)
    tb = min(batch_tile, pbatch0)
    if pbatch0 >= 2 * SUBLANE:
        # Cap tb so the grid has >= 2 steps: lets "parallel" megacore sharding
        # engage on v7x (2 TCs/chip) instead of running the whole batch on one.
        tb = min(tb, _round_up(pl.cdiv(pbatch0, 2), SUBLANE))
    pbatch = _round_up(batch, tb)
    if pbatch != batch:
        x = jnp.pad(x, ((0, pbatch - batch), (0, 0)))
    grid = (pbatch // tb,)

    kernel = _make_mlp_kernel(num_layers)

    in_specs = [pl.BlockSpec((tb, in_dim), lambda i: (i, 0))]
    for p in params:
        # Constant index map -> weights/biases stay VMEM-resident across steps.
        in_specs.append(pl.BlockSpec(p.shape, lambda i: (0, 0)))

    out = pl.pallas_call(
        kernel,
        out_shape=jax.ShapeDtypeStruct((pbatch, out_dim), jnp.float32),
        grid=grid,
        in_specs=in_specs,
        out_specs=pl.BlockSpec((tb, out_dim), lambda i: (i, 0)),
        compiler_params=pltpu.CompilerParams(
            dimension_semantics=("parallel",),      # megacore sharding on v7x
            vmem_limit_bytes=32 * 1024 * 1024,      # safe on v5e/v6e/v7x
        ),
    )(x, *params)

    # Slice away batch padding only; feature dims are already true-width.
    return out[:batch]


def init_mlp_params(key, input_dim, embed_dims, output_layer=True):
    """Deterministic parameter init mirroring the module's layer shapes."""
    dims = []
    d_in = input_dim
    for d_out in embed_dims:
        dims.append((d_in, d_out))
        d_in = d_out
    if output_layer:
        dims.append((d_in, 1))

    weights, biases = [], []
    for (fan_in, fan_out) in dims:
        key, kw, kb = jax.random.split(key, 3)
        bound = 1.0 / jnp.sqrt(jnp.float32(fan_in))
        w = jax.random.uniform(kw, (fan_in, fan_out), jnp.float32, -bound, bound)
        b = jax.random.uniform(kb, (1, fan_out), jnp.float32, -bound, bound)
        weights.append(w)
        biases.append(b)
    return weights, biases


def mlp_reference(x, weights, biases):
    """Pure-JAX f32 reference (highest matmul precision to match in-kernel f32)."""
    h = x.astype(jnp.float32)
    for w, b in zip(weights, biases):
        h = jnp.dot(h, w, precision=jax.lax.Precision.HIGHEST,
                    preferred_element_type=jnp.float32)
        h = jnp.maximum(h + b, 0.0)
    return h


if __name__ == "__main__":
    # MultiLayerPerceptron(input_dim=32, embed_dims=[32, 16], dropout=0.1,
    #                      output_layer=True), eval mode.
    input_dim = 32
    embed_dims = [32, 16]

    key = jax.random.PRNGKey(0)
    key, kx = jax.random.split(key)
    weights, biases = init_mlp_params(key, input_dim, embed_dims, output_layer=True)

    ok = True

    # Check 1: module-sized example, batch=2 (single grid step, tiny tile).
    x_small = jax.random.normal(kx, (2, input_dim), dtype=jnp.float32)
    out = jax.block_until_ready(mlp_forward(x_small, weights, biases))
    ref = mlp_reference(x_small, weights, biases)
    ok &= out.shape == (2, 1)
    ok &= bool(jnp.allclose(out, ref, atol=5e-3, rtol=5e-3))

    # Check 2: non-multiple batch exercising the multi-step parallel grid.
    key, kx2 = jax.random.split(key)
    x_big = jax.random.normal(kx2, (1040, input_dim), dtype=jnp.float32)
    out_big = jax.block_until_ready(mlp_forward(x_big, weights, biases))
    ref_big = mlp_reference(x_big, weights, biases)
    ok &= out_big.shape == (1040, 1)
    ok &= bool(jnp.allclose(out_big, ref_big, atol=5e-3, rtol=5e-3))

    assert ok, "mismatch vs reference"
    print("KERNEL_OK")
</pallas_src>

<mosaic_0001>
module attributes {stable_mosaic.version = 11 : i64} {
  func.func @kernel(%arg0: i32, %arg1: memref<8x32xf32, #tpu.memory_space<vmem>>, %arg2: memref<32x32xf32, #tpu.memory_space<vmem>>, %arg3: memref<1x32xf32, #tpu.memory_space<vmem>>, %arg4: memref<32x16xf32, #tpu.memory_space<vmem>>, %arg5: memref<1x16xf32, #tpu.memory_space<vmem>>, %arg6: memref<16x1xf32, #tpu.memory_space<vmem>>, %arg7: memref<1x1xf32, #tpu.memory_space<vmem>>, %arg8: memref<8x1xf32, #tpu.memory_space<vmem>>) attributes {dimension_semantics = [#tpu.dimension_semantics<parallel>], iteration_bounds = array<i64: 1>, scalar_prefetch = 0 : i64, scratch_operands = 0 : i64, tpu.core_type = #tpu.core_type<tc>, window_params = [{transform_indices = @transform_0, window_bounds = array<i64: 8, 32>}, {pipeline_mode = #tpu.pipeline_mode<synchronous>, transform_indices = @transform_1, window_bounds = array<i64: 32, 32>}, {pipeline_mode = #tpu.pipeline_mode<synchronous>, transform_indices = @transform_2, window_bounds = array<i64: 1, 32>}, {pipeline_mode = #tpu.pipeline_mode<synchronous>, transform_indices = @transform_3, window_bounds = array<i64: 32, 16>}, {pipeline_mode = #tpu.pipeline_mode<synchronous>, transform_indices = @transform_4, window_bounds = array<i64: 1, 16>}, {pipeline_mode = #tpu.pipeline_mode<synchronous>, transform_indices = @transform_5, window_bounds = array<i64: 16, 1>}, {pipeline_mode = #tpu.pipeline_mode<synchronous>, transform_indices = @transform_6, window_bounds = array<i64: 1, 1>}, {transform_indices = @transform_7, window_bounds = array<i64: 8, 1>}]} {
    %c0 = arith.constant 0 : index
    %c0_0 = arith.constant 0 : index
    %0 = vector.load %arg1[%c0, %c0_0] : memref<8x32xf32, #tpu.memory_space<vmem>>, vector<8x32xf32>
    %c0_1 = arith.constant 0 : index
    %c0_2 = arith.constant 0 : index
    %1 = vector.load %arg2[%c0_1, %c0_2] : memref<32x32xf32, #tpu.memory_space<vmem>>, vector<32x32xf32>
    %c0_3 = arith.constant 0 : index
    %c0_4 = arith.constant 0 : index
    %2 = vector.load %arg3[%c0_3, %c0_4] : memref<1x32xf32, #tpu.memory_space<vmem>>, vector<1x32xf32>
    %cst = arith.constant dense<0.000000e+00> : vector<8x32xf32>
    %3 = tpu.matmul %0, %1, %cst {dimension_numbers = #tpu.dot_dimension_numbers<[1], [0], [0], [1], [0, 0, 1, 1], [], []>} : vector<8x32xf32>, vector<32x32xf32>, vector<8x32xf32> -> vector<8x32xf32>
    %4 = vector.broadcast %2 : vector<1x32xf32> to vector<8x32xf32>
    %5 = arith.addf %3, %4 : vector<8x32xf32>
    %cst_5 = arith.constant 0.000000e+00 : f32
    %6 = vector.broadcast %cst_5 : f32 to vector<8x32xf32>
    %7 = arith.maximumf %5, %6 : vector<8x32xf32>
    %c0_6 = arith.constant 0 : index
    %c0_7 = arith.constant 0 : index
    %8 = vector.load %arg4[%c0_6, %c0_7] : memref<32x16xf32, #tpu.memory_space<vmem>>, vector<32x16xf32>
    %c0_8 = arith.constant 0 : index
    %c0_9 = arith.constant 0 : index
    %9 = vector.load %arg5[%c0_8, %c0_9] : memref<1x16xf32, #tpu.memory_space<vmem>>, vector<1x16xf32>
    %cst_10 = arith.constant dense<0.000000e+00> : vector<8x16xf32>
    %10 = tpu.matmul %7, %8, %cst_10 {dimension_numbers = #tpu.dot_dimension_numbers<[1], [0], [0], [1], [0, 0, 1, 1], [], []>} : vector<8x32xf32>, vector<32x16xf32>, vector<8x16xf32> -> vector<8x16xf32>
    %11 = vector.broadcast %9 : vector<1x16xf32> to vector<8x16xf32>
    %12 = arith.addf %10, %11 : vector<8x16xf32>
    %cst_11 = arith.constant 0.000000e+00 : f32
    %13 = vector.broadcast %cst_11 : f32 to vector<8x16xf32>
    %14 = arith.maximumf %12, %13 : vector<8x16xf32>
    %c0_12 = arith.constant 0 : index
    %c0_13 = arith.constant 0 : index
    %15 = vector.load %arg6[%c0_12, %c0_13] : memref<16x1xf32, #tpu.memory_space<vmem>>, vector<16x1xf32>
    %c0_14 = arith.constant 0 : index
    %c0_15 = arith.constant 0 : index
    %16 = vector.load %arg7[%c0_14, %c0_15] : memref<1x1xf32, #tpu.memory_space<vmem>>, vector<1x1xf32>
    %cst_16 = arith.constant dense<0.000000e+00> : vector<8x1xf32>
    %17 = tpu.matmul %14, %15, %cst_16 {dimension_numbers = #tpu.dot_dimension_numbers<[1], [0], [0], [1], [0, 0, 1, 1], [], []>} : vector<8x16xf32>, vector<16x1xf32>, vector<8x1xf32> -> vector<8x1xf32>
    %18 = vector.broadcast %16 : vector<1x1xf32> to vector<8x1xf32>
    %19 = arith.addf %17, %18 : vector<8x1xf32>
    %cst_17 = arith.constant 0.000000e+00 : f32
    %20 = vector.broadcast %cst_17 : f32 to vector<8x1xf32>
    %21 = arith.maximumf %19, %20 : vector<8x1xf32>
    %c0_18 = arith.constant 0 : index
    %c0_19 = arith.constant 0 : index
    %22 = vector.load %arg8[%c0_18, %c0_19] : memref<8x1xf32, #tpu.memory_space<vmem>>, vector<8x1xf32>
    tpu.vector_store %arg8[%c0_18, %c0_19], %21 {strides = array<i32>} : memref<8x1xf32, #tpu.memory_space<vmem>>, vector<8x1xf32>,
    return
  }
  func.func @transform_0(%arg0: i32) -> (i32, i32) {
    %c0_i32 = arith.constant 0 : i32
    %c0_i32_0 = arith.constant 0 : i32
    return %arg0, %c0_i32 : i32, i32
  }
  func.func @transform_1(%arg0: i32) -> (i32, i32) {
    %c0_i32 = arith.constant 0 : i32
    %c0_i32_0 = arith.constant 0 : i32
    %c0_i32_1 = arith.constant 0 : i32
    return %c0_i32, %c0_i32_0 : i32, i32
  }
  func.func @transform_2(%arg0: i32) -> (i32, i32) {
    %c0_i32 = arith.constant 0 : i32
    %c0_i32_0 = arith.constant 0 : i32
    %c0_i32_1 = arith.constant 0 : i32
    return %c0_i32, %c0_i32_0 : i32, i32
  }
  func.func @transform_3(%arg0: i32) -> (i32, i32) {
    %c0_i32 = arith.constant 0 : i32
    %c0_i32_0 = arith.constant 0 : i32
    %c0_i32_1 = arith.constant 0 : i32
    return %c0_i32, %c0_i32_0 : i32, i32
  }
  func.func @transform_4(%arg0: i32) -> (i32, i32) {
    %c0_i32 = arith.constant 0 : i32
    %c0_i32_0 = arith.constant 0 : i32
    %c0_i32_1 = arith.constant 0 : i32
    return %c0_i32, %c0_i32_0 : i32, i32
  }
  func.func @transform_5(%arg0: i32) -> (i32, i32) {
    %c0_i32 = arith.constant 0 : i32
    %c0_i32_0 = arith.constant 0 : i32
    %c0_i32_1 = arith.constant 0 : i32
    return %c0_i32, %c0_i32_0 : i32, i32
  }
  func.func @transform_6(%arg0: i32) -> (i32, i32) {
    %c0_i32 = arith.constant 0 : i32
    %c0_i32_0 = arith.constant 0 : i32
    %c0_i32_1 = arith.constant 0 : i32
    return %c0_i32, %c0_i32_0 : i32, i32
  }
  func.func @transform_7(%arg0: i32) -> (i32, i32) {
    %c0_i32 = arith.constant 0 : i32
    %c0_i32_0 = arith.constant 0 : i32
    return %arg0, %c0_i32 : i32, i32
  }
}

</mosaic_0001>

<llo_original>
// kernel: tpu_custom_call.1
$region0: #{tpu_custom_call.1}
  #allocation0 [shape = 'u32[]', space=smem, size = 0x4, offset = 0x4, fixed_abs, tag = 'smem constant byte address 0x4 - core index']
  #allocation1 [shape = 'u32[72,128]{1,0:T(1,128)}', space=vmem, size = 0x9000, scoped, tag = 'internal scratch']
  #allocation2 [shape = 'f32[1,1]{1,0:T(1,128)S(1)}', space=vmem, size = 0x200, scoped, tag = 'scoped memory for tpu_custom_call.1']
  %s0 = inlined_call_operand.vmem [shape: f32[8,32], index: 0, kind: input, shape index: {}]
  %s1 = inlined_call_operand.vmem [shape: f32[32,32], index: 1, kind: input, shape index: {}]
  %s2 = inlined_call_operand.vmem [shape: f32[1,32], index: 2, kind: input, shape index: {}]
  %s3 = inlined_call_operand.vmem [shape: f32[32,16], index: 3, kind: input, shape index: {}]
  %s4 = inlined_call_operand.vmem [shape: f32[1,16], index: 4, kind: input, shape index: {}]
  %s5 = inlined_call_operand.vmem [shape: f32[16,1], index: 5, kind: input, shape index: {}]
  %s6 = inlined_call_operand.<no memory space> [shape: f32[1,1], index: 6, kind: input, shape index: {}]
  %s7 = inlined_call_operand.vmem [shape: f32[8,1], index: 7, kind: output, shape index: {}]
  %s8 = sld [smem:[#allocation0]]
  $region38: #{tpu_custom_call.1} parent=0
    _
  %s10 = ssub.s32 1, %s8
  %s11 = scalar_select 0, %s10, %s8
  %v12 = vstv %s6
  %13 = vst [vmem:[#allocation2] sm:$0x1] %v12
  // Predicated region
  $region2: #{tpu_custom_call.1} parent=0 // pred_check
    _
  $region3: #{tpu_custom_call.1} parent=0 // pred_check_branch
    %15 = sbr.rel (0) target = $region5
  $region4: #{tpu_custom_call.1} parent=0 // pred_region
    _
  $region5: #{tpu_custom_call.1} parent=0 // pred_fallthru
    _
  // Predicated region
  $region6: #{tpu_custom_call.1} parent=0 // pred_check
    _
  $region7: #{tpu_custom_call.1} parent=0 // pred_check_branch
    %17 = sbr.rel (0) target = $region9
  $region8: #{tpu_custom_call.1} parent=0 // pred_region
    _
  $region9: #{tpu_custom_call.1} parent=0 // pred_fallthru
    _
  // Predicated region
  $region10: #{tpu_custom_call.1} parent=0 // pred_check
    _
  $region11: #{tpu_custom_call.1} parent=0 // pred_check_branch
    %19 = sbr.rel (0) target = $region13
  $region12: #{tpu_custom_call.1} parent=0 // pred_region
    _
  $region13: #{tpu_custom_call.1} parent=0 // pred_fallthru
    _
  // Predicated region
  $region14: #{tpu_custom_call.1} parent=0 // pred_check
    _
  $region15: #{tpu_custom_call.1} parent=0 // pred_check_branch
    %21 = sbr.rel (0) target = $region17
  $region16: #{tpu_custom_call.1} parent=0 // pred_region
    _
  $region17: #{tpu_custom_call.1} parent=0 // pred_fallthru
    _
  // Predicated region
  $region18: #{tpu_custom_call.1} parent=0 // pred_check
    _
  $region19: #{tpu_custom_call.1} parent=0 // pred_check_branch
    %23 = sbr.rel (0) target = $region21
  $region20: #{tpu_custom_call.1} parent=0 // pred_region
    _
  $region21: #{tpu_custom_call.1} parent=0 // pred_fallthru
    _
  // Predicated region
  $region22: #{tpu_custom_call.1} parent=0 // pred_check
    _
  $region23: #{tpu_custom_call.1} parent=0 // pred_check_branch
    %25 = sbr.rel (0) target = $region25
  $region24: #{tpu_custom_call.1} parent=0 // pred_region
    _
  $region25: #{tpu_custom_call.1} parent=0 // pred_fallthru
    _
  // Predicated region
  $region26: #{tpu_custom_call.1} parent=0 // pred_check
    _
  $region27: #{tpu_custom_call.1} parent=0 // pred_check_branch
    %27 = sbr.rel (0) target = $region29
  $region28: #{tpu_custom_call.1} parent=0 // pred_region
    _
  $region29: #{tpu_custom_call.1} parent=0 // pred_fallthru
    _
  %v28 = vld [vmem:[%s0] sm:$0xff]
  %v29 = vld [vmem:[%s1] sm:$0xff]
  %v30 = vld [vmem:[%s1 + $0x8] sm:$0xff]
  %v31 = vld [vmem:[%s1 + $0x10] sm:$0xff]
  %v32 = vld [vmem:[%s1 + $0x18] sm:$0xff]
  %v33 = vld [vmem:[%s2] sm:$0x1]
  %v35 = vperm.slane %v33, 0
  %vm37 = vcmask 261120
  %v39 = vsel %vm37, %v28, 0
  %41 = vmatpush.msra.mxu0 0.0
  %42 = vmatpush.msra.mxu0 0.0
  %43 = vmatpush.msra.mxu0 0.0
  %44 = vmatpush.msra.mxu0 0.0
  %45 = vmatpush.msra.mxu0 0.0
  %46 = vmatpush.msra.mxu0 0.0
  %47 = vmatpush.msra.mxu0 0.0
  %48 = vmatpush.msra.mxu0 0.0
  %49 = vmatpush.msra.mxu0 0.0
  %50 = vmatpush.msra.mxu0 0.0
  %51 = vmatpush.msra.mxu0 0.0
  %52 = vmatpush.msra.mxu0 0.0
  %53 = vmatpush.msra.mxu0 %v32
  %54 = vmatpush.msra.mxu0 %v31
  %55 = vmatpush.msra.mxu0 %v30
  %56 = vmatpush.msra.mxu0 %v29
  %57 = vmatmul.f32.gmra.mxu0 %v39
  %v58 = vpop.f32.mrf.mxu0
  %v59 = vadd.f32 %v35, %v58
  %60 = vdwg.mxu0
  %v61 = vmax.f32 %v59, 0.0
  %v62 = vld [vmem:[%s3] sm:$0xff]
  %v63 = vld [vmem:[%s3 + $0x8] sm:$0xff]
  %v64 = vld [vmem:[%s3 + $0x10] sm:$0xff]
  %v65 = vld [vmem:[%s3 + $0x18] sm:$0xff]
  %v66 = vld [vmem:[%s4] sm:$0x1]
  %v68 = vperm.slane %v66, 0
  %v71 = vsel %vm37, %v61, 0
  %73 = vmatpush.msra.mxu0 0.0
  %74 = vmatpush.msra.mxu0 0.0
  %75 = vmatpush.msra.mxu0 0.0
  %76 = vmatpush.msra.mxu0 0.0
  %77 = vmatpush.msra.mxu0 0.0
  %78 = vmatpush.msra.mxu0 0.0
  %79 = vmatpush.msra.mxu0 0.0
  %80 = vmatpush.msra.mxu0 0.0
  %81 = vmatpush.msra.mxu0 0.0
  %82 = vmatpush.msra.mxu0 0.0
  %83 = vmatpush.msra.mxu0 0.0
  %84 = vmatpush.msra.mxu0 0.0
  %85 = vmatpush.msra.mxu0 %v65
  %86 = vmatpush.msra.mxu0 %v64
  %87 = vmatpush.msra.mxu0 %v63
  %88 = vmatpush.msra.mxu0 %v62
  %89 = vmatmul.f32.gmra.mxu0 %v71
  %v90 = vpop.f32.mrf.mxu0
  %v91 = vadd.f32 %v68, %v90
  %92 = vdwg.mxu0
  %v93 = vmax.f32 %v91, 0.0
  %v94 = vld [vmem:[%s5] sm:$0xff]
  %v95 = vld [vmem:[%s5 + $0x8] sm:$0xff]
  %v96 = vld [vmem:[#allocation2] sm:$0x1]
  %v98 = vperm.slane %v96, 0
  %vm100 = vcmask 130048
  %v102 = vsel %vm100, %v93, 0
  %104 = vmatpush.msra.mxu0 0.0
  %105 = vmatpush.msra.mxu0 0.0
  %106 = vmatpush.msra.mxu0 0.0
  %107 = vmatpush.msra.mxu0 0.0
  %108 = vmatpush.msra.mxu0 0.0
  %109 = vmatpush.msra.mxu0 0.0
  %110 = vmatpush.msra.mxu0 0.0
  %111 = vmatpush.msra.mxu0 0.0
  %112 = vmatpush.msra.mxu0 0.0
  %113 = vmatpush.msra.mxu0 0.0
  %114 = vmatpush.msra.mxu0 0.0
  %115 = vmatpush.msra.mxu0 0.0
  %116 = vmatpush.msra.mxu0 0.0
  %117 = vmatpush.msra.mxu0 0.0
  %118 = vmatpush.msra.mxu0 %v95
  %119 = vmatpush.msra.mxu0 %v94
  %120 = vmatmul.f32.gmra.mxu0 %v102
  %v121 = vpop.f32.mrf.mxu0
  %v122 = vadd.f32 %v98, %v121
  %123 = vdwg.mxu0
  %v124 = vmax.f32 %v122, 0.0
  %vm125 = vcmask 7168
  %126 = vst.msk [vmem:[%s7] sm:$0xff] %vm125, %v124
  // Predicated region
  $region30: #{tpu_custom_call.1} parent=0 // pred_check
    _
  $region31: #{tpu_custom_call.1} parent=0 // pred_check_branch
    %128 = sbr.rel (0) target = $region33
  $region32: #{tpu_custom_call.1} parent=0 // pred_region
    _
  $region33: #{tpu_custom_call.1} parent=0 // pred_fallthru
    _
  // Predicated region
  $region34: #{tpu_custom_call.1} parent=0 // pred_check
    _
  $region35: #{tpu_custom_call.1} parent=0 // pred_check_branch
    %130 = sbr.rel (0) target = $region37
  $region36: #{tpu_custom_call.1} parent=0 // pred_region
    _
  $region37: #{tpu_custom_call.1} parent=0 // pred_fallthru
    _

</llo_original>
